<compile_context>
chip_gen: v6e
topology: v6e:2x2x1
jax: 0.10.0
libtpu: 0.0.40
codegen_flags: <defaults>
</compile_context>

<pallas_src>
import math

import jax
import jax.numpy as jnp
from jax.experimental import pallas as pl
from jax.experimental.pallas import tpu as pltpu


def _fconv_value_kernel(x_ref, w0_ref, b0_ref, w1_ref, b1_ref, w2_ref, b2_ref,
                        o_ref):
    """One block of B examples, batch on lanes.

    x_ref : (L*2, B)    input slab; rows are (length, channel)-major, batch on lanes
    w*_ref: dense block-Toeplitz conv matrices
            w0: (L0*16, L*2)   w1: (L0*8, L0*16)   w2: (L0, L0*8)
    b*_ref: (rows, 1)   per-row bias (channel bias tiled over length)
    o_ref : (1, B)      per-example value (lane-dense)
    """
    x = x_ref[...]                                                   # (L*2, B)
    h = jnp.dot(w0_ref[...], x, preferred_element_type=jnp.float32)
    h = jnp.maximum(h + b0_ref[...], 0.0)                            # (L0*16, B)
    h = jnp.dot(w1_ref[...], h, preferred_element_type=jnp.float32)
    h = jnp.maximum(h + b1_ref[...], 0.0)                            # (L0*8, B)
    h = jnp.dot(w2_ref[...], h, preferred_element_type=jnp.float32)
    h = jnp.maximum(h + b2_ref[...], 0.0)                            # (L0, B)
    # value = sum over length; small cross-sublane reduce.
    o_ref[...] = jnp.sum(h, axis=0, keepdims=True)                   # (1, B)


def _conv1d_to_dense(w, l_in, pad):
    """Fold a Conv1d weight (Cout, Cin, K) into a dense matrix.

    Returns W of shape (L_out*Cout, L_in*Cin) with
      W[l*Cout + co, m*Cin + ci] = w[co, ci, k]  where m = l + k - pad (0 outside).
    Built once in plain JAX (wrapper glue, not per grid step).
    """
    c_out, c_in, k_sz = w.shape
    l_out = l_in + 2 * pad - k_sz + 1
    dense = jnp.zeros((l_out, c_out, l_in, c_in), w.dtype)
    l = jnp.arange(l_out)
    for k in range(k_sz):
        m = l + k - pad
        valid = (m >= 0) & (m < l_in)
        mc = jnp.clip(m, 0, l_in - 1)
        val = jnp.where(valid[:, None, None],
                        jnp.broadcast_to(w[:, :, k][None], (l_out, c_out, c_in)),
                        0.0)
        dense = dense.at[l, :, mc, :].add(val)
    return dense.reshape(l_out * c_out, l_in * c_in)


def fconv_ppo_value_net(x_ncl, params, width, block_b=128):
    """x_ncl: (N, 2, L) float32 (PyTorch NCL layout). Returns (N, 1)."""
    w0, b0, w1, b1, w2, b2 = params
    N, c_in, L = x_ncl.shape
    K = 2 * width + 1
    L0 = L - K + 1
    assert c_in == 2 and L0 > 0

    # ---- wrapper glue (plain JAX, runs once per call, not per grid step) ----
    # Dense block-Toeplitz conv matrices and length-tiled biases.
    w0d = _conv1d_to_dense(w0, L, 0)            # (L0*16, L*2)
    w1d = _conv1d_to_dense(w1, L0, width)       # (L0*8,  L0*16)
    w2d = _conv1d_to_dense(w2, L0, width)       # (L0,    L0*8)
    b0d = jnp.tile(b0, L0)[:, None]             # (L0*16, 1)
    b1d = jnp.tile(b1, L0)[:, None]             # (L0*8,  1)
    b2d = jnp.tile(b2, L0)[:, None]             # (L0,    1)

    # Input slab: (N, 2, L) -> (L*2, N_pad), batch on lanes, padded to block size.
    B = block_b
    n_pad = ((N + B - 1) // B) * B
    x_slab = jnp.transpose(x_ncl, (2, 1, 0)).reshape(L * c_in, N)
    if n_pad != N:
        x_slab = jnp.pad(x_slab, ((0, 0), (0, n_pad - N)))
    num_blocks = n_pad // B

    out = pl.pallas_call(
        _fconv_value_kernel,
        out_shape=jax.ShapeDtypeStruct((num_blocks, B), jnp.float32),
        grid=(num_blocks,),
        in_specs=[
            pl.BlockSpec((L * c_in, B), lambda i: (0, i)),   # x block (batch on lanes)
            pl.BlockSpec(w0d.shape, lambda i: (0, 0)),       # weights: resident in VMEM
            pl.BlockSpec(b0d.shape, lambda i: (0, 0)),
            pl.BlockSpec(w1d.shape, lambda i: (0, 0)),
            pl.BlockSpec(b1d.shape, lambda i: (0, 0)),
            pl.BlockSpec(w2d.shape, lambda i: (0, 0)),
            pl.BlockSpec(b2d.shape, lambda i: (0, 0)),
        ],
        out_specs=pl.BlockSpec((1, B), lambda i: (i, 0)),    # lane-dense output slab
        compiler_params=pltpu.CompilerParams(
            dimension_semantics=("parallel",)),
    )(x_slab, w0d, b0d, w1d, b1d, w2d, b2d)

    return out.reshape(n_pad, 1)[:N]


def _ref_forward(x, params, width):
    """Pure-JAX reference matching the PyTorch module."""
    w0, b0, w1, b1, w2, b2 = params
    dn = ("NCH", "OIH", "NCH")
    s = jax.lax.conv_general_dilated(x, w0, (1,), "VALID",
                                     dimension_numbers=dn) + b0[None, :, None]
    s = jnp.maximum(s, 0.0)
    s = jax.lax.conv_general_dilated(s, w1, (1,), [(width, width)],
                                     dimension_numbers=dn) + b1[None, :, None]
    s = jnp.maximum(s, 0.0)
    s = jax.lax.conv_general_dilated(s, w2, (1,), [(width, width)],
                                     dimension_numbers=dn) + b2[None, :, None]
    s = jnp.maximum(s, 0.0)
    return jnp.sum(s, axis=2)


def _init_params(key, width):
    """Deterministic init mimicking PyTorch Conv1d default U(-1/sqrt(fan_in), ...)."""
    K = 2 * width + 1

    def u(k, shape, fan_in):
        b = 1.0 / math.sqrt(fan_in)
        return jax.random.uniform(k, shape, jnp.float32, -b, b)

    ks = jax.random.split(key, 6)
    w0 = u(ks[0], (16, 2, K), 2 * K)
    b0 = u(ks[1], (16,), 2 * K)
    w1 = u(ks[2], (8, 16, K), 16 * K)
    b1 = u(ks[3], (8,), 16 * K)
    w2 = u(ks[4], (1, 8, K), 8 * K)
    b2 = u(ks[5], (1,), 8 * K)
    return (w0, b0, w1, b1, w2, b2)


if __name__ == "__main__":
    width = 2                      # kernel_size = 5
    N, Cin, L = 2, 2, 16           # small shapes; L0 = L - 2*width = 12 after conv0

    key = jax.random.PRNGKey(0)
    k_x, k_p = jax.random.split(key)
    x = jax.random.normal(k_x, (N, Cin, L), jnp.float32)
    params = _init_params(k_p, width)

    out = fconv_ppo_value_net(x, params, width)
    out = jax.block_until_ready(out)

    ref = jax.block_until_ready(_ref_forward(x, params, width))
    assert out.shape == (N, 1), out.shape
    assert jnp.allclose(out, ref, atol=1e-4, rtol=1e-4), (out, ref)

    print("KERNEL_OK")
</pallas_src>

<mosaic_0001>
module attributes {stable_mosaic.version = 11 : i64} {
  func.func @_fconv_value_kernel(%arg0: i32, %arg1: memref<32x128xf32, #tpu.memory_space<vmem>>, %arg2: memref<192x32xf32, #tpu.memory_space<vmem>>, %arg3: memref<192x1xf32, #tpu.memory_space<vmem>>, %arg4: memref<96x192xf32, #tpu.memory_space<vmem>>, %arg5: memref<96x1xf32, #tpu.memory_space<vmem>>, %arg6: memref<12x96xf32, #tpu.memory_space<vmem>>, %arg7: memref<12x1xf32, #tpu.memory_space<vmem>>, %arg8: memref<1x128xf32, #tpu.memory_space<vmem>>) attributes {dimension_semantics = [#tpu.dimension_semantics<parallel>], iteration_bounds = array<i64: 1>, scalar_prefetch = 0 : i64, scratch_operands = 0 : i64, tpu.core_type = #tpu.core_type<tc>, window_params = [{transform_indices = @transform_0, window_bounds = array<i64: 32, 128>}, {pipeline_mode = #tpu.pipeline_mode<synchronous>, transform_indices = @transform_1, window_bounds = array<i64: 192, 32>}, {pipeline_mode = #tpu.pipeline_mode<synchronous>, transform_indices = @transform_2, window_bounds = array<i64: 192, 1>}, {pipeline_mode = #tpu.pipeline_mode<synchronous>, transform_indices = @transform_3, window_bounds = array<i64: 96, 192>}, {pipeline_mode = #tpu.pipeline_mode<synchronous>, transform_indices = @transform_4, window_bounds = array<i64: 96, 1>}, {pipeline_mode = #tpu.pipeline_mode<synchronous>, transform_indices = @transform_5, window_bounds = array<i64: 12, 96>}, {pipeline_mode = #tpu.pipeline_mode<synchronous>, transform_indices = @transform_6, window_bounds = array<i64: 12, 1>}, {transform_indices = @transform_7, window_bounds = array<i64: 1, 128>}]} {
    %c0 = arith.constant 0 : index
    %c0_0 = arith.constant 0 : index
    %0 = vector.load %arg1[%c0, %c0_0] : memref<32x128xf32, #tpu.memory_space<vmem>>, vector<32x128xf32>
    %c0_1 = arith.constant 0 : index
    %c0_2 = arith.constant 0 : index
    %1 = vector.load %arg2[%c0_1, %c0_2] : memref<192x32xf32, #tpu.memory_space<vmem>>, vector<192x32xf32>
    %cst = arith.constant dense<0.000000e+00> : vector<192x128xf32>
    %2 = tpu.matmul %1, %0, %cst {dimension_numbers = #tpu.dot_dimension_numbers<[1], [0], [0], [1], [0, 0, 1, 1], [], []>} : vector<192x32xf32>, vector<32x128xf32>, vector<192x128xf32> -> vector<192x128xf32>
    %c0_3 = arith.constant 0 : index
    %c0_4 = arith.constant 0 : index
    %3 = vector.load %arg3[%c0_3, %c0_4] : memref<192x1xf32, #tpu.memory_space<vmem>>, vector<192x1xf32>
    %4 = vector.broadcast %3 : vector<192x1xf32> to vector<192x128xf32>
    %5 = arith.addf %2, %4 : vector<192x128xf32>
    %cst_5 = arith.constant 0.000000e+00 : f32
    %6 = vector.broadcast %cst_5 : f32 to vector<192x128xf32>
    %7 = arith.maximumf %5, %6 : vector<192x128xf32>
    %c0_6 = arith.constant 0 : index
    %c0_7 = arith.constant 0 : index
    %8 = vector.load %arg4[%c0_6, %c0_7] : memref<96x192xf32, #tpu.memory_space<vmem>>, vector<96x192xf32>
    %cst_8 = arith.constant dense<0.000000e+00> : vector<96x128xf32>
    %9 = tpu.matmul %8, %7, %cst_8 {dimension_numbers = #tpu.dot_dimension_numbers<[1], [0], [0], [1], [0, 0, 1, 1], [], []>} : vector<96x192xf32>, vector<192x128xf32>, vector<96x128xf32> -> vector<96x128xf32>
    %c0_9 = arith.constant 0 : index
    %c0_10 = arith.constant 0 : index
    %10 = vector.load %arg5[%c0_9, %c0_10] : memref<96x1xf32, #tpu.memory_space<vmem>>, vector<96x1xf32>
    %11 = vector.broadcast %10 : vector<96x1xf32> to vector<96x128xf32>
    %12 = arith.addf %9, %11 : vector<96x128xf32>
    %cst_11 = arith.constant 0.000000e+00 : f32
    %13 = vector.broadcast %cst_11 : f32 to vector<96x128xf32>
    %14 = arith.maximumf %12, %13 : vector<96x128xf32>
    %c0_12 = arith.constant 0 : index
    %c0_13 = arith.constant 0 : index
    %15 = vector.load %arg6[%c0_12, %c0_13] : memref<12x96xf32, #tpu.memory_space<vmem>>, vector<12x96xf32>
    %cst_14 = arith.constant dense<0.000000e+00> : vector<12x128xf32>
    %16 = tpu.matmul %15, %14, %cst_14 {dimension_numbers = #tpu.dot_dimension_numbers<[1], [0], [0], [1], [0, 0, 1, 1], [], []>} : vector<12x96xf32>, vector<96x128xf32>, vector<12x128xf32> -> vector<12x128xf32>
    %c0_15 = arith.constant 0 : index
    %c0_16 = arith.constant 0 : index
    %17 = vector.load %arg7[%c0_15, %c0_16] : memref<12x1xf32, #tpu.memory_space<vmem>>, vector<12x1xf32>
    %18 = vector.broadcast %17 : vector<12x1xf32> to vector<12x128xf32>
    %19 = arith.addf %16, %18 : vector<12x128xf32>
    %cst_17 = arith.constant 0.000000e+00 : f32
    %20 = vector.broadcast %cst_17 : f32 to vector<12x128xf32>
    %21 = arith.maximumf %19, %20 : vector<12x128xf32>
    %cst_18 = arith.constant dense<0.000000e+00> : vector<128xf32>
    %22 = vector.multi_reduction <add>, %21, %cst_18 [0] : vector<12x128xf32> to vector<128xf32>
    %23 = vector.shape_cast %22 : vector<128xf32> to vector<1x128xf32>
    %c0_19 = arith.constant 0 : index
    %c0_20 = arith.constant 0 : index
    %24 = vector.load %arg8[%c0_19, %c0_20] : memref<1x128xf32, #tpu.memory_space<vmem>>, vector<1x128xf32>
    tpu.vector_store %arg8[%c0_19, %c0_20], %23 {strides = array<i32>} : memref<1x128xf32, #tpu.memory_space<vmem>>, vector<1x128xf32>,
    return
  }
  func.func @transform_0(%arg0: i32) -> (i32, i32) {
    %c0_i32 = arith.constant 0 : i32
    %c0_i32_0 = arith.constant 0 : i32
    return %c0_i32, %arg0 : i32, i32
  }
  func.func @transform_1(%arg0: i32) -> (i32, i32) {
    %c0_i32 = arith.constant 0 : i32
    %c0_i32_0 = arith.constant 0 : i32
    %c0_i32_1 = arith.constant 0 : i32
    return %c0_i32, %c0_i32_0 : i32, i32
  }
  func.func @transform_2(%arg0: i32) -> (i32, i32) {
    %c0_i32 = arith.constant 0 : i32
    %c0_i32_0 = arith.constant 0 : i32
    %c0_i32_1 = arith.constant 0 : i32
    return %c0_i32, %c0_i32_0 : i32, i32
  }
  func.func @transform_3(%arg0: i32) -> (i32, i32) {
    %c0_i32 = arith.constant 0 : i32
    %c0_i32_0 = arith.constant 0 : i32
    %c0_i32_1 = arith.constant 0 : i32
    return %c0_i32, %c0_i32_0 : i32, i32
  }
  func.func @transform_4(%arg0: i32) -> (i32, i32) {
    %c0_i32 = arith.constant 0 : i32
    %c0_i32_0 = arith.constant 0 : i32
    %c0_i32_1 = arith.constant 0 : i32
    return %c0_i32, %c0_i32_0 : i32, i32
  }
  func.func @transform_5(%arg0: i32) -> (i32, i32) {
    %c0_i32 = arith.constant 0 : i32
    %c0_i32_0 = arith.constant 0 : i32
    %c0_i32_1 = arith.constant 0 : i32
    return %c0_i32, %c0_i32_0 : i32, i32
  }
  func.func @transform_6(%arg0: i32) -> (i32, i32) {
    %c0_i32 = arith.constant 0 : i32
    %c0_i32_0 = arith.constant 0 : i32
    %c0_i32_1 = arith.constant 0 : i32
    return %c0_i32, %c0_i32_0 : i32, i32
  }
  func.func @transform_7(%arg0: i32) -> (i32, i32) {
    %c0_i32 = arith.constant 0 : i32
    %c0_i32_0 = arith.constant 0 : i32
    return %arg0, %c0_i32 : i32, i32
  }
}

</mosaic_0001>

<llo_original>
// kernel: tpu_custom_call.1
$region0: #{tpu_custom_call.1}
  #allocation0 [shape = 'u32[]', space=smem, size = 0x4, offset = 0x4, fixed_abs, tag = 'smem constant byte address 0x4 - core index']
  #allocation1 [shape = 'u32[144,128]{1,0:T(1,128)}', space=vmem, size = 0x12000, scoped, tag = 'internal scratch']
  %s0 = inlined_call_operand.vmem [shape: f32[32,128], index: 0, kind: input, shape index: {}]
  %s1 = inlined_call_operand.vmem [shape: f32[192,32], index: 1, kind: input, shape index: {}]
  %s2 = inlined_call_operand.vmem [shape: f32[192,1], index: 2, kind: input, shape index: {}]
  %s3 = inlined_call_operand.vmem [shape: f32[96,192], index: 3, kind: input, shape index: {}]
  %s4 = inlined_call_operand.vmem [shape: f32[96,1], index: 4, kind: input, shape index: {}]
  %s5 = inlined_call_operand.vmem [shape: f32[12,96], index: 5, kind: input, shape index: {}]
  %s6 = inlined_call_operand.vmem [shape: f32[12,1], index: 6, kind: input, shape index: {}]
  %s7 = inlined_call_operand.hbm [shape: f32[1,128], index: 7, kind: output, shape index: {}]
  %s8 = sld [smem:[#allocation0]]
  $region38: #{tpu_custom_call.1} parent=0
    _
  %s10 = ssub.s32 1, %s8
  %s11 = scalar_select 0, %s10, %s8
  $region1: #{tpu_custom_call.1} parent=0
    #allocation2 [shape = 'u8[512]{0}', space=vmem, size = 0x400, scoped, tag = 'output window, operand 0, single buffered']
    #allocation3 [shape = 's32[1]{0}', space=sflag, size = 0x4, scoped, tag = 'scoped memory for tpu_custom_call.1']
    %12 = vsyncpa [#allocation3], 0
    // Predicated region
    $region2: #{tpu_custom_call.1} parent=1 // pred_check
      _
    $region3: #{tpu_custom_call.1} parent=1 // pred_check_branch
      %14 = sbr.rel (0) target = $region5
    $region4: #{tpu_custom_call.1} parent=1 // pred_region
      _
    $region5: #{tpu_custom_call.1} parent=1 // pred_fallthru
      _
    // Predicated region
    $region6: #{tpu_custom_call.1} parent=1 // pred_check
      _
    $region7: #{tpu_custom_call.1} parent=1 // pred_check_branch
      %16 = sbr.rel (0) target = $region9
    $region8: #{tpu_custom_call.1} parent=1 // pred_region
      _
    $region9: #{tpu_custom_call.1} parent=1 // pred_fallthru
      _
    // Predicated region
    $region10: #{tpu_custom_call.1} parent=1 // pred_check
      _
    $region11: #{tpu_custom_call.1} parent=1 // pred_check_branch
      %18 = sbr.rel (0) target = $region13
    $region12: #{tpu_custom_call.1} parent=1 // pred_region
      _
    $region13: #{tpu_custom_call.1} parent=1 // pred_fallthru
      _
    // Predicated region
    $region14: #{tpu_custom_call.1} parent=1 // pred_check
      _
    $region15: #{tpu_custom_call.1} parent=1 // pred_check_branch
      %20 = sbr.rel (0) target = $region17
    $region16: #{tpu_custom_call.1} parent=1 // pred_region
      _
    $region17: #{tpu_custom_call.1} parent=1 // pred_fallthru
      _
    // Predicated region
    $region18: #{tpu_custom_call.1} parent=1 // pred_check
      _
    $region19: #{tpu_custom_call.1} parent=1 // pred_check_branch
      %22 = sbr.rel (0) target = $region21
    $region20: #{tpu_custom_call.1} parent=1 // pred_region
      _
    $region21: #{tpu_custom_call.1} parent=1 // pred_fallthru
      _
    // Predicated region
    $region22: #{tpu_custom_call.1} parent=1 // pred_check
      _
    $region23: #{tpu_custom_call.1} parent=1 // pred_check_branch
      %24 = sbr.rel (0) target = $region25
    $region24: #{tpu_custom_call.1} parent=1 // pred_region
      _
    $region25: #{tpu_custom_call.1} parent=1 // pred_fallthru
      _
    // Predicated region
    $region26: #{tpu_custom_call.1} parent=1 // pred_check
      _
    $region27: #{tpu_custom_call.1} parent=1 // pred_check_branch
      %26 = sbr.rel (0) target = $region29
    $region28: #{tpu_custom_call.1} parent=1 // pred_region
      _
    $region29: #{tpu_custom_call.1} parent=1 // pred_fallthru
      _
    %v27 = vld [vmem:[%s0] sm:$0xff]
    %v28 = vld [vmem:[%s0 + $0x8] sm:$0xff]
    %v29 = vld [vmem:[%s0 + $0x10] sm:$0xff]
    %v30 = vld [vmem:[%s0 + $0x18] sm:$0xff]
    %v31 = vld [vmem:[%s1] sm:$0xff]
    %v32 = vld [vmem:[%s1 + $0x8] sm:$0xff]
    %v33 = vld [vmem:[%s1 + $0x10] sm:$0xff]
    %v34 = vld [vmem:[%s1 + $0x18] sm:$0xff]
    %v35 = vld [vmem:[%s1 + $0x20] sm:$0xff]
    %v36 = vld [vmem:[%s1 + $0x28] sm:$0xff]
    %v37 = vld [vmem:[%s1 + $0x30] sm:$0xff]
    %v38 = vld [vmem:[%s1 + $0x38] sm:$0xff]
    %v39 = vld [vmem:[%s1 + $0x40] sm:$0xff]
    %v40 = vld [vmem:[%s1 + $0x48] sm:$0xff]
    %v41 = vld [vmem:[%s1 + $0x50] sm:$0xff]
    %v42 = vld [vmem:[%s1 + $0x58] sm:$0xff]
    %v43 = vld [vmem:[%s1 + $0x60] sm:$0xff]
    %v44 = vld [vmem:[%s1 + $0x68] sm:$0xff]
    %v45 = vld [vmem:[%s1 + $0x70] sm:$0xff]
    %v46 = vld [vmem:[%s1 + $0x78] sm:$0xff]
    %v47 = vld [vmem:[%s1 + $0x80] sm:$0xff]
    %v48 = vld [vmem:[%s1 + $0x88] sm:$0xff]
    %v49 = vld [vmem:[%s1 + $0x90] sm:$0xff]
    %v50 = vld [vmem:[%s1 + $0x98] sm:$0xff]
    %v51 = vld [vmem:[%s1 + $0xa0] sm:$0xff]
    %v52 = vld [vmem:[%s1 + $0xa8] sm:$0xff]
    %v53 = vld [vmem:[%s1 + $0xb0] sm:$0xff]
    %v54 = vld [vmem:[%s1 + $0xb8] sm:$0xff]
    %v55 = vld [vmem:[%s2] sm:$0xff]
    %v56 = vld [vmem:[%s2 + $0x8] sm:$0xff]
    %v57 = vld [vmem:[%s2 + $0x10] sm:$0xff]
    %v58 = vld [vmem:[%s2 + $0x18] sm:$0xff]
    %v59 = vld [vmem:[%s2 + $0x20] sm:$0xff]
    %v60 = vld [vmem:[%s2 + $0x28] sm:$0xff]
    %v61 = vld [vmem:[%s2 + $0x30] sm:$0xff]
    %v62 = vld [vmem:[%s2 + $0x38] sm:$0xff]
    %v63 = vld [vmem:[%s2 + $0x40] sm:$0xff]
    %v64 = vld [vmem:[%s2 + $0x48] sm:$0xff]
    %v65 = vld [vmem:[%s2 + $0x50] sm:$0xff]
    %v66 = vld [vmem:[%s2 + $0x58] sm:$0xff]
    %v67 = vld [vmem:[%s2 + $0x60] sm:$0xff]
    %v68 = vld [vmem:[%s2 + $0x68] sm:$0xff]
    %v69 = vld [vmem:[%s2 + $0x70] sm:$0xff]
    %v70 = vld [vmem:[%s2 + $0x78] sm:$0xff]
    %v71 = vld [vmem:[%s2 + $0x80] sm:$0xff]
    %v72 = vld [vmem:[%s2 + $0x88] sm:$0xff]
    %v73 = vld [vmem:[%s2 + $0x90] sm:$0xff]
    %v74 = vld [vmem:[%s2 + $0x98] sm:$0xff]
    %v75 = vld [vmem:[%s2 + $0xa0] sm:$0xff]
    %v76 = vld [vmem:[%s2 + $0xa8] sm:$0xff]
    %v77 = vld [vmem:[%s2 + $0xb0] sm:$0xff]
    %v78 = vld [vmem:[%s2 + $0xb8] sm:$0xff]
    %80 = vset.pattern.permute.xlu0 0
    %81 = vperm.xlu0 %80, %v55
    %v82 = vpop.permute.xlu0 %81
    %85 = vset.pattern.permute.xlu0 0
    %86 = vperm.xlu0 %85, %v56
    %v87 = vpop.permute.xlu0 %86
    %90 = vset.pattern.permute.xlu0 0
    %91 = vperm.xlu0 %90, %v57
    %v92 = vpop.permute.xlu0 %91
    %95 = vset.pattern.permute.xlu0 0
    %96 = vperm.xlu0 %95, %v58
    %v97 = vpop.permute.xlu0 %96
    %100 = vset.pattern.permute.xlu0 0
    %101 = vperm.xlu0 %100, %v59
    %v102 = vpop.permute.xlu0 %101
    %105 = vset.pattern.permute.xlu0 0
    %106 = vperm.xlu0 %105, %v60
    %v107 = vpop.permute.xlu0 %106
    %110 = vset.pattern.permute.xlu0 0
    %111 = vperm.xlu0 %110, %v61
    %v112 = vpop.permute.xlu0 %111
    %115 = vset.pattern.permute.xlu0 0
    %116 = vperm.xlu0 %115, %v62
    %v117 = vpop.permute.xlu0 %116
    %120 = vset.pattern.permute.xlu0 0
    %121 = vperm.xlu0 %120, %v63
    %v122 = vpop.permute.xlu0 %121
    %125 = vset.pattern.permute.xlu0 0
    %126 = vperm.xlu0 %125, %v64
    %v127 = vpop.permute.xlu0 %126
    %130 = vset.pattern.permute.xlu0 0
    %131 = vperm.xlu0 %130, %v65
    %v132 = vpop.permute.xlu0 %131
    %135 = vset.pattern.permute.xlu0 0
    %136 = vperm.xlu0 %135, %v66
    %v137 = vpop.permute.xlu0 %136
    %140 = vset.pattern.permute.xlu0 0
    %141 = vperm.xlu0 %140, %v67
    %v142 = vpop.permute.xlu0 %141
    %145 = vset.pattern.permute.xlu0 0
    %146 = vperm.xlu0 %145, %v68
    %v147 = vpop.permute.xlu0 %146
    %150 = vset.pattern.permute.xlu0 0
    %151 = vperm.xlu0 %150, %v69
    %v152 = vpop.permute.xlu0 %151
    %155 = vset.pattern.permute.xlu0 0
    %156 = vperm.xlu0 %155, %v70
    %v157 = vpop.permute.xlu0 %156
    %160 = vset.pattern.permute.xlu0 0
    %161 = vperm.xlu0 %160, %v71
    %v162 = vpop.permute.xlu0 %161
    %165 = vset.pattern.permute.xlu0 0
    %166 = vperm.xlu0 %165, %v72
    %v167 = vpop.permute.xlu0 %166
    %170 = vset.pattern.permute.xlu0 0
    %171 = vperm.xlu0 %170, %v73
    %v172 = vpop.permute.xlu0 %171
    %175 = vset.pattern.permute.xlu0 0
    %176 = vperm.xlu0 %175, %v74
    %v177 = vpop.permute.xlu0 %176
    %180 = vset.pattern.permute.xlu0 0
    %181 = vperm.xlu0 %180, %v75
    %v182 = vpop.permute.xlu0 %181
    %185 = vset.pattern.permute.xlu0 0
    %186 = vperm.xlu0 %185, %v76
    %v187 = vpop.permute.xlu0 %186
    %190 = vset.pattern.permute.xlu0 0
    %191 = vperm.xlu0 %190, %v77
    %v192 = vpop.permute.xlu0 %191
    %195 = vset.pattern.permute.xlu0 0
    %196 = vperm.xlu0 %195, %v78
    %v197 = vpop.permute.xlu0 %196
    %vm199 = vcmask 261120
    %v201 = vsel %vm199, %v31, 0
    %v204 = vsel %vm199, %v32, 0
    %v207 = vsel %vm199, %v33, 0
    %v210 = vsel %vm199, %v34, 0
    %v213 = vsel %vm199, %v35, 0
    %v216 = vsel %vm199, %v36, 0
    %v219 = vsel %vm199, %v37, 0
    %v222 = vsel %vm199, %v38, 0
    %v225 = vsel %vm199, %v39, 0
    %v228 = vsel %vm199, %v40, 0
    %v231 = vsel %vm199, %v41, 0
    %v234 = vsel %vm199, %v42, 0
    %v237 = vsel %vm199, %v43, 0
    %v240 = vsel %vm199, %v44, 0
    %v243 = vsel %vm199, %v45, 0
    %v246 = vsel %vm199, %v46, 0
    %v249 = vsel %vm199, %v47, 0
    %v252 = vsel %vm199, %v48, 0
    %v255 = vsel %vm199, %v49, 0
    %v258 = vsel %vm199, %v50, 0
    %v261 = vsel %vm199, %v51, 0
    %v264 = vsel %vm199, %v52, 0
    %v267 = vsel %vm199, %v53, 0
    %v270 = vsel %vm199, %v54, 0
    %272 = vmatprep.subr.mxu0 0.0
    %273 = vmatpush1.msra.mxu0 0.0
    %274 = vmatprep.subr.mxu0 0.0
    %275 = vmatpush1.msra.mxu0 0.0
    %276 = vmatprep.subr.mxu0 0.0
    %277 = vmatpush1.msra.mxu0 0.0
    %278 = vmatprep.subr.mxu0 0.0
    %279 = vmatpush1.msra.mxu0 0.0
    %280 = vmatprep.subr.mxu0 0.0
    %281 = vmatpush1.msra.mxu0 0.0
    %282 = vmatprep.subr.mxu0 0.0
    %283 = vmatpush1.msra.mxu0 0.0
    %284 = vmatprep.subr.mxu0 0.0
    %285 = vmatpush1.msra.mxu0 0.0
    %286 = vmatprep.subr.mxu0 0.0
    %287 = vmatpush1.msra.mxu0 0.0
    %288 = vmatprep.subr.mxu0 0.0
    %289 = vmatpush1.msra.mxu0 0.0
    %290 = vmatprep.subr.mxu0 0.0
    %291 = vmatpush1.msra.mxu0 0.0
    %292 = vmatprep.subr.mxu0 0.0
    %293 = vmatpush1.msra.mxu0 0.0
    %294 = vmatprep.subr.mxu0 0.0
    %295 = vmatpush1.msra.mxu0 0.0
    %296 = vmatprep.subr.mxu0 0.0
    %297 = vmatpush1.msra.mxu0 %v30
    %298 = vmatprep.subr.mxu0 0.0
    %299 = vmatpush1.msra.mxu0 %v29
    %300 = vmatprep.subr.mxu0 0.0
    %301 = vmatpush1.msra.mxu0 %v28
    %302 = vmatprep.subr.mxu0 0.0
    %303 = vmatpush1.msra.mxu0 %v27
    %304 = vmatprep.subr.mxu0 0.0
    %305 = vmatpush2.msra.mxu0 0.0
    %306 = vmatprep.subr.mxu0 0.0
    %307 = vmatpush2.msra.mxu0 0.0
    %308 = vmatprep.subr.mxu0 0.0
    %309 = vmatpush2.msra.mxu0 0.0
    %310 = vmatprep.subr.mxu0 0.0
    %311 = vmatpush2.msra.mxu0 0.0
    %312 = vmatprep.subr.mxu0 0.0
    %313 = vmatpush2.msra.mxu0 0.0
    %314 = vmatprep.subr.mxu0 0.0
    %315 = vmatpush2.msra.mxu0 0.0
    %316 = vmatprep.subr.mxu0 0.0
    %317 = vmatpush2.msra.mxu0 0.0
    %318 = vmatprep.subr.mxu0 0.0
    %319 = vmatpush2.msra.mxu0 0.0
    %320 = vmatprep.subr.mxu0 0.0
    %321 = vmatpush2.msra.mxu0 0.0
    %322 = vmatprep.subr.mxu0 0.0
    %323 = vmatpush2.msra.mxu0 0.0
    %324 = vmatprep.subr.mxu0 0.0
    %325 = vmatpush2.msra.mxu0 0.0
    %326 = vmatprep.subr.mxu0 0.0
    %327 = vmatpush2.msra.mxu0 0.0
    %328 = vmatprep.subr.mxu0 0.0
    %329 = vmatpush2.msra.mxu0 0.0
    %330 = vmatprep.subr.mxu0 0.0
    %331 = vmatpush2.msra.mxu0 0.0
    %332 = vmatprep.subr.mxu0 0.0
    %333 = vmatpush2.msra.mxu0 0.0
    %334 = vmatprep.subr.mxu0 0.0
    %335 = vmatpush2.msra.mxu0 0.0
    %336 = vmatprep.mubr.f32.mxu0 0.0
    %337 = vmatmul.mubr.f32.gmra.mxu0 %v201
    %v338 = vpop.f32.mrf.mxu0
    %v339 = vadd.f32 %v82, %v338
    %v340 = vpop.f32.mrf.mxu0
    %341 = vmatprep.mubr.f32.mxu0 0.0
    %342 = vmatmul.mubr.f32.gmra.mxu0 %v204
    %v343 = vpop.f32.mrf.mxu0
    %v344 = vadd.f32 %v87, %v343
    %v345 = vpop.f32.mrf.mxu0
    %346 = vmatprep.mubr.f32.mxu0 0.0
    %347 = vmatmul.mubr.f32.gmra.mxu0 %v207
    %v348 = vpop.f32.mrf.mxu0
    %v349 = vadd.f32 %v92, %v348
    %v350 = vpop.f32.mrf.mxu0
    %351 = vmatprep.mubr.f32.mxu0 0.0
    %352 = vmatmul.mubr.f32.gmra.mxu0 %v210
    %v353 = vpop.f32.mrf.mxu0
    %v354 = vadd.f32 %v97, %v353
    %v355 = vpop.f32.mrf.mxu0
    %356 = vmatprep.mubr.f32.mxu0 0.0
    %357 = vmatmul.mubr.f32.gmra.mxu0 %v213
    %v358 = vpop.f32.mrf.mxu0
    %v359 = vadd.f32 %v102, %v358
    %v360 = vpop.f32.mrf.mxu0
    %361 = vmatprep.mubr.f32.mxu0 0.0
    %362 = vmatmul.mubr.f32.gmra.mxu0 %v216
    %v363 = vpop.f32.mrf.mxu0
    %v364 = vadd.f32 %v107, %v363
    %v365 = vpop.f32.mrf.mxu0
    %366 = vmatprep.mubr.f32.mxu0 0.0
    %367 = vmatmul.mubr.f32.gmra.mxu0 %v219
    %v368 = vpop.f32.mrf.mxu0
    %v369 = vadd.f32 %v112, %v368
    %v370 = vpop.f32.mrf.mxu0
    %371 = vmatprep.mubr.f32.mxu0 0.0
    %372 = vmatmul.mubr.f32.gmra.mxu0 %v222
    %v373 = vpop.f32.mrf.mxu0
    %v374 = vadd.f32 %v117, %v373
    %v375 = vpop.f32.mrf.mxu0
    %376 = vmatprep.mubr.f32.mxu0 0.0
    %377 = vmatmul.mubr.f32.gmra.mxu0 %v225
    %v378 = vpop.f32.mrf.mxu0
    %v379 = vadd.f32 %v122, %v378
    %v380 = vpop.f32.mrf.mxu0
    %381 = vmatprep.mubr.f32.mxu0 0.0
    %382 = vmatmul.mubr.f32.gmra.mxu0 %v228
    %v383 = vpop.f32.mrf.mxu0
    %v384 = vadd.f32 %v127, %v383
    %v385 = vpop.f32.mrf.mxu0
    %386 = vmatprep.mubr.f32.mxu0 0.0
    %387 = vmatmul.mubr.f32.gmra.mxu0 %v231
    %v388 = vpop.f32.mrf.mxu0
    %v389 = vadd.f32 %v132, %v388
    %v390 = vpop.f32.mrf.mxu0
    %391 = vmatprep.mubr.f32.mxu0 0.0
    %392 = vmatmul.mubr.f32.gmra.mxu0 %v234
    %v393 = vpop.f32.mrf.mxu0
    %v394 = vadd.f32 %v137, %v393
    %v395 = vpop.f32.mrf.mxu0
    %396 = vmatprep.mubr.f32.mxu0 0.0
    %397 = vmatmul.mubr.f32.gmra.mxu0 %v237
    %v398 = vpop.f32.mrf.mxu0
    %v399 = vadd.f32 %v142, %v398
    %v400 = vpop.f32.mrf.mxu0
    %401 = vmatprep.mubr.f32.mxu0 0.0
    %402 = vmatmul.mubr.f32.gmra.mxu0 %v240
    %v403 = vpop.f32.mrf.mxu0
    %v404 = vadd.f32 %v147, %v403
    %v405 = vpop.f32.mrf.mxu0
    %406 = vmatprep.mubr.f32.mxu0 0.0
    %407 = vmatmul.mubr.f32.gmra.mxu0 %v243
    %v408 = vpop.f32.mrf.mxu0
    %v409 = vadd.f32 %v152, %v408
    %v410 = vpop.f32.mrf.mxu0
    %411 = vmatprep.mubr.f32.mxu0 0.0
    %412 = vmatmul.mubr.f32.gmra.mxu0 %v246
    %v413 = vpop.f32.mrf.mxu0
    %v414 = vadd.f32 %v157, %v413
    %v415 = vpop.f32.mrf.mxu0
    %416 = vmatprep.mubr.f32.mxu0 0.0
    %417 = vmatmul.mubr.f32.gmra.mxu0 %v249
    %v418 = vpop.f32.mrf.mxu0
    %v419 = vadd.f32 %v162, %v418
    %v420 = vpop.f32.mrf.mxu0
    %421 = vmatprep.mubr.f32.mxu0 0.0
    %422 = vmatmul.mubr.f32.gmra.mxu0 %v252
    %v423 = vpop.f32.mrf.mxu0
    %v424 = vadd.f32 %v167, %v423
    %v425 = vpop.f32.mrf.mxu0
    %426 = vmatprep.mubr.f32.mxu0 0.0
    %427 = vmatmul.mubr.f32.gmra.mxu0 %v255
    %v428 = vpop.f32.mrf.mxu0
    %v429 = vadd.f32 %v172, %v428
    %v430 = vpop.f32.mrf.mxu0
    %431 = vmatprep.mubr.f32.mxu0 0.0
    %432 = vmatmul.mubr.f32.gmra.mxu0 %v258
    %v433 = vpop.f32.mrf.mxu0
    %v434 = vadd.f32 %v177, %v433
    %v435 = vpop.f32.mrf.mxu0
    %436 = vmatprep.mubr.f32.mxu0 0.0
    %437 = vmatmul.mubr.f32.gmra.mxu0 %v261
    %v438 = vpop.f32.mrf.mxu0
    %v439 = vadd.f32 %v182, %v438
    %v440 = vpop.f32.mrf.mxu0
    %441 = vmatprep.mubr.f32.mxu0 0.0
    %442 = vmatmul.mubr.f32.gmra.mxu0 %v264
    %v443 = vpop.f32.mrf.mxu0
    %v444 = vadd.f32 %v187, %v443
    %v445 = vpop.f32.mrf.mxu0
    %446 = vmatprep.mubr.f32.mxu0 0.0
    %447 = vmatmul.mubr.f32.gmra.mxu0 %v267
    %v448 = vpop.f32.mrf.mxu0
    %v449 = vadd.f32 %v192, %v448
    %v450 = vpop.f32.mrf.mxu0
    %451 = vmatprep.mubr.f32.mxu0 0.0
    %452 = vmatmul.mubr.f32.gmra.mxu0 %v270
    %v453 = vpop.f32.mrf.mxu0
    %v454 = vadd.f32 %v197, %v453
    %v455 = vpop.f32.mrf.mxu0
    %456 = vdwg.mxu0
    %v457 = vmax.f32 %v339, 0.0
    %v458 = vmax.f32 %v344, 0.0
    %v459 = vmax.f32 %v349, 0.0
    %v460 = vmax.f32 %v354, 0.0
    %v461 = vmax.f32 %v359, 0.0
    %v462 = vmax.f32 %v364, 0.0
    %v463 = vmax.f32 %v369, 0.0
    %v464 = vmax.f32 %v374, 0.0
    %v465 = vmax.f32 %v379, 0.0
    %v466 = vmax.f32 %v384, 0.0
    %v467 = vmax.f32 %v389, 0.0
    %v468 = vmax.f32 %v394, 0.0
    %v469 = vmax.f32 %v399, 0.0
    %v470 = vmax.f32 %v404, 0.0
    %v471 = vmax.f32 %v409, 0.0
    %v472 = vmax.f32 %v414, 0.0
    %v473 = vmax.f32 %v419, 0.0
    %v474 = vmax.f32 %v424, 0.0
    %v475 = vmax.f32 %v429, 0.0
    %v476 = vmax.f32 %v434, 0.0
    %v477 = vmax.f32 %v439, 0.0
    %v478 = vmax.f32 %v444, 0.0
    %v479 = vmax.f32 %v449, 0.0
    %v480 = vmax.f32 %v454, 0.0
    %v481 = vld [vmem:[%s3] sm:$0xff]
    %v482 = vld [vmem:[%s3 + $0x8] sm:$0xff]
    %v483 = vld [vmem:[%s3 + $0x10] sm:$0xff]
    %v484 = vld [vmem:[%s3 + $0x18] sm:$0xff]
    %v485 = vld [vmem:[%s3 + $0x20] sm:$0xff]
    %v486 = vld [vmem:[%s3 + $0x28] sm:$0xff]
    %v487 = vld [vmem:[%s3 + $0x30] sm:$0xff]
    %v488 = vld [vmem:[%s3 + $0x38] sm:$0xff]
    %v489 = vld [vmem:[%s3 + $0x40] sm:$0xff]
    %v490 = vld [vmem:[%s3 + $0x48] sm:$0xff]
    %v491 = vld [vmem:[%s3 + $0x50] sm:$0xff]
    %v492 = vld [vmem:[%s3 + $0x58] sm:$0xff]
    %v493 = vld [vmem:[%s3 + $0x60] sm:$0xff]
    %v494 = vld [vmem:[%s3 + $0x68] sm:$0xff]
    %v495 = vld [vmem:[%s3 + $0x70] sm:$0xff]
    %v496 = vld [vmem:[%s3 + $0x78] sm:$0xff]
    %v497 = vld [vmem:[%s3 + $0x80] sm:$0xff]
    %v498 = vld [vmem:[%s3 + $0x88] sm:$0xff]
    %v499 = vld [vmem:[%s3 + $0x90] sm:$0xff]
    %v500 = vld [vmem:[%s3 + $0x98] sm:$0xff]
    %v501 = vld [vmem:[%s3 + $0xa0] sm:$0xff]
    %v502 = vld [vmem:[%s3 + $0xa8] sm:$0xff]
    %v503 = vld [vmem:[%s3 + $0xb0] sm:$0xff]
    %v504 = vld [vmem:[%s3 + $0xb8] sm:$0xff]
    %v505 = vld [vmem:[%s4] sm:$0xff]
    %v506 = vld [vmem:[%s4 + $0x8] sm:$0xff]
    %v507 = vld [vmem:[%s4 + $0x10] sm:$0xff]
    %v508 = vld [vmem:[%s4 + $0x18] sm:$0xff]
    %v509 = vld [vmem:[%s4 + $0x20] sm:$0xff]
    %v510 = vld [vmem:[%s4 + $0x28] sm:$0xff]
    %v511 = vld [vmem:[%s4 + $0x30] sm:$0xff]
    %v512 = vld [vmem:[%s4 + $0x38] sm:$0xff]
    %v513 = vld [vmem:[%s4 + $0x40] sm:$0xff]
    %v514 = vld [vmem:[%s4 + $0x48] sm:$0xff]
    %v515 = vld [vmem:[%s4 + $0x50] sm:$0xff]
    %v516 = vld [vmem:[%s4 + $0x58] sm:$0xff]
    %518 = vset.pattern.permute.xlu0 0
    %519 = vperm.xlu0 %518, %v505
    %v520 = vpop.permute.xlu0 %519
    %523 = vset.pattern.permute.xlu0 0
    %524 = vperm.xlu0 %523, %v506
    %v525 = vpop.permute.xlu0 %524
    %528 = vset.pattern.permute.xlu0 0
    %529 = vperm.xlu0 %528, %v507
    %v530 = vpop.permute.xlu0 %529
    %533 = vset.pattern.permute.xlu0 0
    %534 = vperm.xlu0 %533, %v508
    %v535 = vpop.permute.xlu0 %534
    %538 = vset.pattern.permute.xlu0 0
    %539 = vperm.xlu0 %538, %v509
    %v540 = vpop.permute.xlu0 %539
    %543 = vset.pattern.permute.xlu0 0
    %544 = vperm.xlu0 %543, %v510
    %v545 = vpop.permute.xlu0 %544
    %548 = vset.pattern.permute.xlu0 0
    %549 = vperm.xlu0 %548, %v511
    %v550 = vpop.permute.xlu0 %549
    %553 = vset.pattern.permute.xlu0 0
    %554 = vperm.xlu0 %553, %v512
    %v555 = vpop.permute.xlu0 %554
    %558 = vset.pattern.permute.xlu0 0
    %559 = vperm.xlu0 %558, %v513
    %v560 = vpop.permute.xlu0 %559
    %563 = vset.pattern.permute.xlu0 0
    %564 = vperm.xlu0 %563, %v514
    %v565 = vpop.permute.xlu0 %564
    %568 = vset.pattern.permute.xlu0 0
    %569 = vperm.xlu0 %568, %v515
    %v570 = vpop.permute.xlu0 %569
    %573 = vset.pattern.permute.xlu0 0
    %574 = vperm.xlu0 %573, %v516
    %v575 = vpop.permute.xlu0 %574
    %vm577 = vcmask 523264
    %v579 = vsel %vm577, %v482, 0
    %v582 = vsel %vm577, %v484, 0
    %v585 = vsel %vm577, %v486, 0
    %v588 = vsel %vm577, %v488, 0
    %v591 = vsel %vm577, %v490, 0
    %v594 = vsel %vm577, %v492, 0
    %v597 = vsel %vm577, %v494, 0
    %v600 = vsel %vm577, %v496, 0
    %v603 = vsel %vm577, %v498, 0
    %v606 = vsel %vm577, %v500, 0
    %v609 = vsel %vm577, %v502, 0
    %v612 = vsel %vm577, %v504, 0
    %614 = vmatprep.subr.mxu0 0.0
    %615 = vmatpush1.msra.mxu0 %v472
    %616 = vmatprep.subr.mxu0 0.0
    %617 = vmatpush1.msra.mxu0 %v471
    %618 = vmatprep.subr.mxu0 0.0
    %619 = vmatpush1.msra.mxu0 %v470
    %620 = vmatprep.subr.mxu0 0.0
    %621 = vmatpush1.msra.mxu0 %v469
    %622 = vmatprep.subr.mxu0 0.0
    %623 = vmatpush1.msra.mxu0 %v468
    %624 = vmatprep.subr.mxu0 0.0
    %625 = vmatpush1.msra.mxu0 %v467
    %626 = vmatprep.subr.mxu0 0.0
    %627 = vmatpush1.msra.mxu0 %v466
    %628 = vmatprep.subr.mxu0 0.0
    %629 = vmatpush1.msra.mxu0 %v465
    %630 = vmatprep.subr.mxu0 0.0
    %631 = vmatpush1.msra.mxu0 %v464
    %632 = vmatprep.subr.mxu0 0.0
    %633 = vmatpush1.msra.mxu0 %v463
    %634 = vmatprep.subr.mxu0 0.0
    %635 = vmatpush1.msra.mxu0 %v462
    %636 = vmatprep.subr.mxu0 0.0
    %637 = vmatpush1.msra.mxu0 %v461
    %638 = vmatprep.subr.mxu0 0.0
    %639 = vmatpush1.msra.mxu0 %v460
    %640 = vmatprep.subr.mxu0 0.0
    %641 = vmatpush1.msra.mxu0 %v459
    %642 = vmatprep.subr.mxu0 0.0
    %643 = vmatpush1.msra.mxu0 %v458
    %644 = vmatprep.subr.mxu0 0.0
    %645 = vmatpush1.msra.mxu0 %v457
    %646 = vmatprep.subr.mxu0 0.0
    %647 = vmatpush2.msra.mxu0 0.0
    %648 = vmatprep.subr.mxu0 0.0
    %649 = vmatpush2.msra.mxu0 0.0
    %650 = vmatprep.subr.mxu0 0.0
    %651 = vmatpush2.msra.mxu0 0.0
    %652 = vmatprep.subr.mxu0 0.0
    %653 = vmatpush2.msra.mxu0 0.0
    %654 = vmatprep.subr.mxu0 0.0
    %655 = vmatpush2.msra.mxu0 0.0
    %656 = vmatprep.subr.mxu0 0.0
    %657 = vmatpush2.msra.mxu0 0.0
    %658 = vmatprep.subr.mxu0 0.0
    %659 = vmatpush2.msra.mxu0 0.0
    %660 = vmatprep.subr.mxu0 0.0
    %661 = vmatpush2.msra.mxu0 0.0
    %662 = vmatprep.subr.mxu0 0.0
    %663 = vmatpush2.msra.mxu0 %v480
    %664 = vmatprep.subr.mxu0 0.0
    %665 = vmatpush2.msra.mxu0 %v479
    %666 = vmatprep.subr.mxu0 0.0
    %667 = vmatpush2.msra.mxu0 %v478
    %668 = vmatprep.subr.mxu0 0.0
    %669 = vmatpush2.msra.mxu0 %v477
    %670 = vmatprep.subr.mxu0 0.0
    %671 = vmatpush2.msra.mxu0 %v476
    %672 = vmatprep.subr.mxu0 0.0
    %673 = vmatpush2.msra.mxu0 %v475
    %674 = vmatprep.subr.mxu0 0.0
    %675 = vmatpush2.msra.mxu0 %v474
    %676 = vmatprep.subr.mxu0 0.0
    %677 = vmatpush2.msra.mxu0 %v473
    %678 = vmatprep.mubr.f32.mxu0 %v579
    %679 = vmatmul.mubr.f32.gmra.mxu0 %v481
    %v680 = vpop.f32.mrf.mxu0
    %v681 = vadd.f32 %v520, %v680
    %v682 = vpop.f32.mrf.mxu0
    %683 = vmatprep.mubr.f32.mxu0 %v582
    %684 = vmatmul.mubr.f32.gmra.mxu0 %v483
    %v685 = vpop.f32.mrf.mxu0
    %v686 = vadd.f32 %v525, %v685
    %v687 = vpop.f32.mrf.mxu0
    %688 = vmatprep.mubr.f32.mxu0 %v585
    %689 = vmatmul.mubr.f32.gmra.mxu0 %v485
    %v690 = vpop.f32.mrf.mxu0
    %v691 = vadd.f32 %v530, %v690
    %v692 = vpop.f32.mrf.mxu0
    %693 = vmatprep.mubr.f32.mxu0 %v588
    %694 = vmatmul.mubr.f32.gmra.mxu0 %v487
    %v695 = vpop.f32.mrf.mxu0
    %v696 = vadd.f32 %v535, %v695
    %v697 = vpop.f32.mrf.mxu0
    %698 = vmatprep.mubr.f32.mxu0 %v591
    %699 = vmatmul.mubr.f32.gmra.mxu0 %v489
    %v700 = vpop.f32.mrf.mxu0
    %v701 = vadd.f32 %v540, %v700
    %v702 = vpop.f32.mrf.mxu0
    %703 = vmatprep.mubr.f32.mxu0 %v594
    %704 = vmatmul.mubr.f32.gmra.mxu0 %v491
    %v705 = vpop.f32.mrf.mxu0
    %v706 = vadd.f32 %v545, %v705
    %v707 = vpop.f32.mrf.mxu0
    %708 = vmatprep.mubr.f32.mxu0 %v597
    %709 = vmatmul.mubr.f32.gmra.mxu0 %v493
    %v710 = vpop.f32.mrf.mxu0
    %v711 = vadd.f32 %v550, %v710
    %v712 = vpop.f32.mrf.mxu0
    %713 = vmatprep.mubr.f32.mxu0 %v600
    %714 = vmatmul.mubr.f32.gmra.mxu0 %v495
    %v715 = vpop.f32.mrf.mxu0
    %v716 = vadd.f32 %v555, %v715
    %v717 = vpop.f32.mrf.mxu0
    %718 = vmatprep.mubr.f32.mxu0 %v603
    %719 = vmatmul.mubr.f32.gmra.mxu0 %v497
    %v720 = vpop.f32.mrf.mxu0
    %v721 = vadd.f32 %v560, %v720
    %v722 = vpop.f32.mrf.mxu0
    %723 = vmatprep.mubr.f32.mxu0 %v606
    %724 = vmatmul.mubr.f32.gmra.mxu0 %v499
    %v725 = vpop.f32.mrf.mxu0
    %v726 = vadd.f32 %v565, %v725
    %v727 = vpop.f32.mrf.mxu0
    %728 = vmatprep.mubr.f32.mxu0 %v609
    %729 = vmatmul.mubr.f32.gmra.mxu0 %v501
    %v730 = vpop.f32.mrf.mxu0
    %v731 = vadd.f32 %v570, %v730
    %v732 = vpop.f32.mrf.mxu0
    %733 = vmatprep.mubr.f32.mxu0 %v612
    %734 = vmatmul.mubr.f32.gmra.mxu0 %v503
    %v735 = vpop.f32.mrf.mxu0
    %v736 = vadd.f32 %v575, %v735
    %v737 = vpop.f32.mrf.mxu0
    %738 = vdwg.mxu0
    %v739 = vmax.f32 %v681, 0.0
    %v740 = vmax.f32 %v686, 0.0
    %v741 = vmax.f32 %v691, 0.0
    %v742 = vmax.f32 %v696, 0.0
    %v743 = vmax.f32 %v701, 0.0
    %v744 = vmax.f32 %v706, 0.0
    %v745 = vmax.f32 %v711, 0.0
    %v746 = vmax.f32 %v716, 0.0
    %v747 = vmax.f32 %v721, 0.0
    %v748 = vmax.f32 %v726, 0.0
    %v749 = vmax.f32 %v731, 0.0
    %v750 = vmax.f32 %v736, 0.0
    %v751 = vld [vmem:[%s5] sm:$0xff]
    %v752 = vld [vmem:[%s5 + $0x8] sm:$0xf]
    %v753 = vld [vmem:[%s6] sm:$0xff]
    %v754 = vld [vmem:[%s6 + $0x8] sm:$0xf]
    %756 = vset.pattern.permute.xlu0 0
    %757 = vperm.xlu0 %756, %v753
    %v758 = vpop.permute.xlu0 %757
    %761 = vset.pattern.permute.xlu0 0
    %762 = vperm.xlu0 %761, %v754
    %v763 = vpop.permute.xlu0 %762
    %vm765 = vcmask 785408
    %v767 = vsel %vm765, %v751, 0
    %v770 = vsel %vm765, %v752, 0
    %772 = vmatprep.subr.mxu0 0.0
    %773 = vmatpush1.msra.mxu0 0.0
    %774 = vmatprep.subr.mxu0 0.0
    %775 = vmatpush1.msra.mxu0 0.0
    %776 = vmatprep.subr.mxu0 0.0
    %777 = vmatpush1.msra.mxu0 0.0
    %778 = vmatprep.subr.mxu0 0.0
    %779 = vmatpush1.msra.mxu0 0.0
    %780 = vmatprep.subr.mxu0 0.0
    %781 = vmatpush1.msra.mxu0 %v750
    %782 = vmatprep.subr.mxu0 0.0
    %783 = vmatpush1.msra.mxu0 %v749
    %784 = vmatprep.subr.mxu0 0.0
    %785 = vmatpush1.msra.mxu0 %v748
    %786 = vmatprep.subr.mxu0 0.0
    %787 = vmatpush1.msra.mxu0 %v747
    %788 = vmatprep.subr.mxu0 0.0
    %789 = vmatpush1.msra.mxu0 %v746
    %790 = vmatprep.subr.mxu0 0.0
    %791 = vmatpush1.msra.mxu0 %v745
    %792 = vmatprep.subr.mxu0 0.0
    %793 = vmatpush1.msra.mxu0 %v744
    %794 = vmatprep.subr.mxu0 0.0
    %795 = vmatpush1.msra.mxu0 %v743
    %796 = vmatprep.subr.mxu0 0.0
    %797 = vmatpush1.msra.mxu0 %v742
    %798 = vmatprep.subr.mxu0 0.0
    %799 = vmatpush1.msra.mxu0 %v741
    %800 = vmatprep.subr.mxu0 0.0
    %801 = vmatpush1.msra.mxu0 %v740
    %802 = vmatprep.subr.mxu0 0.0
    %803 = vmatpush1.msra.mxu0 %v739
    %804 = vmatprep.subr.mxu0 0.0
    %805 = vmatpush2.msra.mxu0 0.0
    %806 = vmatprep.subr.mxu0 0.0
    %807 = vmatpush2.msra.mxu0 0.0
    %808 = vmatprep.subr.mxu0 0.0
    %809 = vmatpush2.msra.mxu0 0.0
    %810 = vmatprep.subr.mxu0 0.0
    %811 = vmatpush2.msra.mxu0 0.0
    %812 = vmatprep.subr.mxu0 0.0
    %813 = vmatpush2.msra.mxu0 0.0
    %814 = vmatprep.subr.mxu0 0.0
    %815 = vmatpush2.msra.mxu0 0.0
    %816 = vmatprep.subr.mxu0 0.0
    %817 = vmatpush2.msra.mxu0 0.0
    %818 = vmatprep.subr.mxu0 0.0
    %819 = vmatpush2.msra.mxu0 0.0
    %820 = vmatprep.subr.mxu0 0.0
    %821 = vmatpush2.msra.mxu0 0.0
    %822 = vmatprep.subr.mxu0 0.0
    %823 = vmatpush2.msra.mxu0 0.0
    %824 = vmatprep.subr.mxu0 0.0
    %825 = vmatpush2.msra.mxu0 0.0
    %826 = vmatprep.subr.mxu0 0.0
    %827 = vmatpush2.msra.mxu0 0.0
    %828 = vmatprep.subr.mxu0 0.0
    %829 = vmatpush2.msra.mxu0 0.0
    %830 = vmatprep.subr.mxu0 0.0
    %831 = vmatpush2.msra.mxu0 0.0
    %832 = vmatprep.subr.mxu0 0.0
    %833 = vmatpush2.msra.mxu0 0.0
    %834 = vmatprep.subr.mxu0 0.0
    %835 = vmatpush2.msra.mxu0 0.0
    %836 = vmatprep.mubr.f32.mxu0 0.0
    %837 = vmatmul.mubr.f32.gmra.mxu0 %v767
    %v838 = vpop.f32.mrf.mxu0
    %v839 = vadd.f32 %v758, %v838
    %v840 = vpop.f32.mrf.mxu0
    %841 = vmatprep.mubr.f32.mxu0 0.0
    %842 = vmatmul.mubr.f32.gmra.mxu0 %v770
    %v843 = vpop.f32.mrf.mxu0
    %v844 = vadd.f32 %v763, %v843
    %v845 = vpop.f32.mrf.mxu0
    %846 = vdwg.mxu0
    %v847 = vmax.f32 %v839, 0.0
    %v848 = vmax.f32 %v844, 0.0
    %vm849 = vcmask 1043456
    %v850 = vsel %vm849, %v848, 0.0
    %v851 = vadd.f32 %v847, %v850
    %v852 = vrot.slane %v851, 4
    %v853 = vadd.f32 %v851, %v852
    %v854 = vrot.slane %v853, 2
    %v855 = vadd.f32 %v853, %v854
    %v856 = vrot.slane %v855, 1
    %v857 = vadd.f32 %v855, %v856
    %858 = vst [vmem:[#allocation2] sm:$0x1] %v857
    // Predicated region
    $region30: #{tpu_custom_call.1} parent=1 // pred_check
      _
    $region31: #{tpu_custom_call.1} parent=1 // pred_check_branch
      %860 = sbr.rel (0) target = $region33
    $region32: #{tpu_custom_call.1} parent=1 // pred_region
      %s862 = ssub.s32 16, 16
      %863 = vsyncadd [#allocation3], %s862
      %s865 = sshll.u32 [#allocation2], 4
      %s866 = int_to_ptr.vmem [resolvable:$true] %s865
      %868 = dma.vmem_to_hbm [thread:$0]  %s866, 16, %s7, [#allocation3]
    $region33: #{tpu_custom_call.1} parent=1 // pred_fallthru
      _
    // Predicated region
    $region34: #{tpu_custom_call.1} parent=1 // pred_check
      _
    $region35: #{tpu_custom_call.1} parent=1 // pred_check_branch
      %870 = sbr.rel (0) target = $region37
    $region36: #{tpu_custom_call.1} parent=1 // pred_region
      %871 = dma.done [#allocation3], 16
    $region37: #{tpu_custom_call.1} parent=1 // pred_fallthru
      _
    %872 = vsyncpa [#allocation3], 1

</llo_original>
